<compile_context>
chip_gen: v7x
topology: tpu7x:2x2x1
jax: 0.10.0
libtpu: 0.0.40
codegen_flags: <defaults>
</compile_context>

<pallas_src>
import functools

import jax
import jax.numpy as jnp
from jax.experimental import pallas as pl
from jax.experimental.pallas import tpu as pltpu


# ---------------------------------------------------------------------------
# Kernel: one row-block (single expert) x one intermediate-dim chunk.
#   grid = (num_row_blocks, num_i_chunks); i-chunk is the reduction axis.
# ---------------------------------------------------------------------------
def _int8_moe_kernel(
    block_expert_ref,      # scalar-prefetch (SMEM): expert id per row block
    x_ref,                 # (rb, D)       f32   gathered/grouped activations
    w1_ref,                # (1, i_blk, D) int8
    w3_ref,                # (1, i_blk, D) int8
    w2_ref,                # (1, D, i_blk) int8
    s1_ref,                # (1, 1, i_blk) f32   per-output-channel scales
    s3_ref,                # (1, 1, i_blk) f32
    s2_ref,                # (1, 1, D)     f32
    o_ref,                 # (rb, D)       f32
    acc_ref,               # (rb, D)       f32 VMEM scratch accumulator
):
  del block_expert_ref  # consumed by the index_maps only
  i = pl.program_id(1)

  @pl.when(i == 0)
  def _():
    acc_ref[...] = jnp.zeros_like(acc_ref)

  # bf16 at the MXU inputs, f32 accumulation.  int8 weights are dequantized
  # in-kernel (int8 -> f32 -> bf16: both converts lower cleanly on Mosaic).
  x = x_ref[...].astype(jnp.bfloat16)                       # (rb, D)
  w1 = w1_ref[0].astype(jnp.float32).astype(jnp.bfloat16)   # (i_blk, D)
  w3 = w3_ref[0].astype(jnp.float32).astype(jnp.bfloat16)   # (i_blk, D)
  w2 = w2_ref[0].astype(jnp.float32).astype(jnp.bfloat16)   # (D, i_blk)
  s1 = s1_ref[0, 0, :][None, :]                             # (1, i_blk)
  s3 = s3_ref[0, 0, :][None, :]                             # (1, i_blk)

  h1 = jax.lax.dot_general(
      x, w1, (((1,), (1,)), ((), ())),
      preferred_element_type=jnp.float32) * s1               # (rb, i_blk)
  h3 = jax.lax.dot_general(
      x, w3, (((1,), (1,)), ((), ())),
      preferred_element_type=jnp.float32) * s3               # (rb, i_blk)
  g = (h1 * jax.nn.sigmoid(h1)) * h3                          # silu(h1) * h3

  acc_ref[...] += jax.lax.dot_general(
      g.astype(jnp.bfloat16), w2, (((1,), (1,)), ((), ())),
      preferred_element_type=jnp.float32)                     # (rb, D)

  @pl.when(i == pl.num_programs(1) - 1)
  def _():
    s2 = s2_ref[0, 0, :][None, :]                             # (1, D)
    o_ref[...] = (acc_ref[...] * s2).astype(o_ref.dtype)


# ---------------------------------------------------------------------------
# Wrapper: routing glue (sort/group by expert) + pallas_call.
# ---------------------------------------------------------------------------
def int8_conditional_ffn(x, expert_indices, w1, w2, w3,
                         w1_scaler, w2_scaler, w3_scaler,
                         *, row_block=8, i_block=128):
  """x: (T, D) f32, expert_indices: (T, A) int  ->  (T, A, D) f32."""
  T, D = x.shape
  A = expert_indices.shape[1]
  E, I, _ = w1.shape

  if I <= i_block:
    i_block = I
  assert I % i_block == 0
  assert i_block == I or i_block % 128 == 0, "lane-dim tiling needs x128 chunks"
  num_i_blocks = I // i_block

  # ---- group (token, activated-expert) rows by expert (JAX glue) ----
  N = T * A
  flat_e = expert_indices.reshape(-1).astype(jnp.int32)                # (N,)
  token_of_row = jnp.arange(N, dtype=jnp.int32) // A

  order = jnp.argsort(flat_e)
  sorted_e = flat_e[order]
  e_range = jnp.arange(E, dtype=jnp.int32)
  group_sizes = jnp.sum(flat_e[None, :] == e_range[:, None],
                        axis=1).astype(jnp.int32)                      # (E,)
  group_starts = jnp.concatenate(
      [jnp.zeros((1,), jnp.int32), jnp.cumsum(group_sizes)[:-1].astype(jnp.int32)])
  padded_sizes = ((group_sizes + row_block - 1) // row_block) * row_block
  padded_starts = jnp.concatenate(
      [jnp.zeros((1,), jnp.int32), jnp.cumsum(padded_sizes)[:-1].astype(jnp.int32)])
  padded_ends = padded_starts + padded_sizes

  j = jnp.arange(N, dtype=jnp.int32)
  rank = j - group_starts[sorted_e]
  dest_sorted = padded_starts[sorted_e] + rank
  dest = jnp.zeros((N,), jnp.int32).at[order].set(dest_sorted)         # (N,)

  # static padded row count / block count (worst-case padding per group)
  num_blocks = (N + E * (row_block - 1) + row_block - 1) // row_block
  n_pad = num_blocks * row_block

  xg = jnp.zeros((n_pad, D), x.dtype).at[dest].set(x[token_of_row])    # (n_pad, D)
  block_start = jnp.arange(num_blocks, dtype=jnp.int32) * row_block
  block_expert = jnp.clip(
      jnp.searchsorted(padded_ends, block_start, side="right"),
      0, E - 1).astype(jnp.int32)                                      # (num_blocks,)

  # scales as (E, 1, C) so the last (lane) dim is the channel dim
  s1 = w1_scaler[:, None, :].astype(jnp.float32)   # (E, 1, I)
  s3 = w3_scaler[:, None, :].astype(jnp.float32)   # (E, 1, I)
  s2 = w2_scaler[:, None, :].astype(jnp.float32)   # (E, 1, D)

  grid_spec = pltpu.PrefetchScalarGridSpec(
      num_scalar_prefetch=1,
      grid=(num_blocks, num_i_blocks),
      in_specs=[
          pl.BlockSpec((row_block, D), lambda b, i, be: (b, 0)),        # xg
          pl.BlockSpec((1, i_block, D), lambda b, i, be: (be[b], i, 0)),  # w1
          pl.BlockSpec((1, i_block, D), lambda b, i, be: (be[b], i, 0)),  # w3
          pl.BlockSpec((1, D, i_block), lambda b, i, be: (be[b], 0, i)),  # w2
          pl.BlockSpec((1, 1, i_block), lambda b, i, be: (be[b], 0, i)),  # s1
          pl.BlockSpec((1, 1, i_block), lambda b, i, be: (be[b], 0, i)),  # s3
          pl.BlockSpec((1, 1, D), lambda b, i, be: (be[b], 0, 0)),        # s2
      ],
      out_specs=pl.BlockSpec((row_block, D), lambda b, i, be: (b, 0)),
      scratch_shapes=[pltpu.VMEM((row_block, D), jnp.float32)],
  )

  yg = pl.pallas_call(
      _int8_moe_kernel,
      out_shape=jax.ShapeDtypeStruct((n_pad, D), jnp.float32),
      grid_spec=grid_spec,
      compiler_params=pltpu.CompilerParams(
          dimension_semantics=("parallel", "arbitrary")),
  )(block_expert, xg, w1, w3, w2, s1, s3, s2)

  # un-group: pick each original (token, activated-expert) row back out
  return yg[dest].reshape(T, A, D)


# ---------------------------------------------------------------------------
# Pure-JAX reference (mirrors the torch long-seq path; numerically == short)
# ---------------------------------------------------------------------------
def reference_ffn(x, expert_indices, w1, w2, w3, s1, s2, s3):
  w1f = w1.astype(jnp.float32)
  w2f = w2.astype(jnp.float32)
  w3f = w3.astype(jnp.float32)
  x1 = jax.nn.silu(jnp.einsum("ti,eoi->teo", x, w1f) * s1[None])   # (T, E, I)
  x3 = jnp.einsum("ti,eoi->teo", x, w3f) * s3[None]                # (T, E, I)
  eo = jnp.einsum("teo,eio->tei", x1 * x3, w2f) * s2[None]         # (T, E, D)
  return jnp.take_along_axis(eo, expert_indices[:, :, None], axis=1)  # (T, A, D)


if __name__ == "__main__":
  # Small config consistent with the module (dim << intermediate, top-2 of 4).
  T = 8            # seq_len (>= 4 -> torch "long seq" path; same semantics)
  D = 32           # config.dim
  I = 256          # config.intermediate_size
  E = 4            # config.num_experts
  A = 2            # activated experts per token (top-k)

  root = jax.random.PRNGKey(0)
  kx, kg, k1, k2, k3, ks1, ks2, ks3 = jax.random.split(root, 8)

  x = jax.random.normal(kx, (T, D), jnp.float32)
  # top-2 routing indices from random gate scores (distinct experts per token)
  gate_scores = jax.random.normal(kg, (T, E), jnp.float32)
  _, expert_indices = jax.lax.top_k(gate_scores, A)
  expert_indices = expert_indices.astype(jnp.int32)

  w1 = jax.random.randint(k1, (E, I, D), -64, 64, dtype=jnp.int8)
  w2 = jax.random.randint(k2, (E, D, I), -64, 64, dtype=jnp.int8)
  w3 = jax.random.randint(k3, (E, I, D), -64, 64, dtype=jnp.int8)
  w1_scaler = jax.random.uniform(ks1, (E, I), jnp.float32, 0.005, 0.02)
  w2_scaler = jax.random.uniform(ks2, (E, D), jnp.float32, 0.005, 0.02)
  w3_scaler = jax.random.uniform(ks3, (E, I), jnp.float32, 0.005, 0.02)

  fwd = functools.partial(int8_conditional_ffn, row_block=8, i_block=128)
  out = fwd(x, expert_indices, w1, w2, w3, w1_scaler, w2_scaler, w3_scaler)
  out = jax.block_until_ready(out)

  assert out.shape == (T, A, D)
  assert bool(jnp.all(jnp.isfinite(out)))

  ref = reference_ffn(x, expert_indices, w1, w2, w3,
                      w1_scaler, w2_scaler, w3_scaler)
  max_ref = float(jnp.max(jnp.abs(ref)))
  max_err = float(jnp.max(jnp.abs(out - ref)))
  assert max_err <= 0.05 * (max_ref + 1e-6), (max_err, max_ref)

  print("KERNEL_OK")
</pallas_src>

<mosaic_0001>
module attributes {stable_mosaic.version = 11 : i64} {
  func.func @_int8_moe_kernel(%arg0: i32, %arg1: i32, %arg2: memref<6xi32, #tpu.memory_space<smem>>, %arg3: memref<8x32xf32, #tpu.memory_space<vmem>>, %arg4: memref<1x128x32xi8, #tpu.memory_space<vmem>>, %arg5: memref<1x128x32xi8, #tpu.memory_space<vmem>>, %arg6: memref<1x32x128xi8, #tpu.memory_space<vmem>>, %arg7: memref<1x1x128xf32, #tpu.memory_space<vmem>>, %arg8: memref<1x1x128xf32, #tpu.memory_space<vmem>>, %arg9: memref<1x1x32xf32, #tpu.memory_space<vmem>>, %arg10: memref<8x32xf32, #tpu.memory_space<vmem>>, %arg11: memref<8x32xf32, #tpu.memory_space<vmem>>) attributes {dimension_semantics = [#tpu.dimension_semantics<parallel>, #tpu.dimension_semantics<arbitrary>], iteration_bounds = array<i64: 6, 2>, scalar_prefetch = 1 : i64, scratch_operands = 1 : i64, tpu.core_type = #tpu.core_type<tc>, window_params = [{transform_indices = @transform_0, window_bounds = array<i64: 8, 32>}, {transform_indices = @transform_1, window_bounds = array<i64: 1, 128, 32>}, {transform_indices = @transform_2, window_bounds = array<i64: 1, 128, 32>}, {transform_indices = @transform_3, window_bounds = array<i64: 1, 32, 128>}, {transform_indices = @transform_4, window_bounds = array<i64: 1, 1, 128>}, {transform_indices = @transform_5, window_bounds = array<i64: 1, 1, 128>}, {transform_indices = @transform_6, window_bounds = array<i64: 1, 1, 32>}, {transform_indices = @transform_7, window_bounds = array<i64: 8, 32>}]} {
    %c0_i32 = arith.constant 0 : i32
    %0 = arith.cmpi eq, %arg1, %c0_i32 : i32
    %1 = arith.extui %0 : i1 to i32
    %c0_i32_0 = arith.constant 0 : i32
    %2 = arith.cmpi ne, %1, %c0_i32_0 : i32
    scf.if %2 {
      %cst_25 = arith.constant 0.000000e+00 : f32
      %44 = vector.broadcast %cst_25 : f32 to vector<8x32xf32>
      %c0_26 = arith.constant 0 : index
      %c0_27 = arith.constant 0 : index
      %45 = vector.load %arg11[%c0_26, %c0_27] : memref<8x32xf32, #tpu.memory_space<vmem>>, vector<8x32xf32>
      tpu.vector_store %arg11[%c0_26, %c0_27], %44 {strides = array<i32>} : memref<8x32xf32, #tpu.memory_space<vmem>>, vector<8x32xf32>,
    } else {
    }
    %c0 = arith.constant 0 : index
    %c0_1 = arith.constant 0 : index
    %3 = vector.load %arg3[%c0, %c0_1] : memref<8x32xf32, #tpu.memory_space<vmem>>, vector<8x32xf32>
    %4 = arith.truncf %3 : vector<8x32xf32> to vector<8x32xbf16>
    %c0_2 = arith.constant 0 : index
    %c0_3 = arith.constant 0 : index
    %c0_4 = arith.constant 0 : index
    %5 = vector.load %arg4[%c0_2, %c0_3, %c0_4] : memref<1x128x32xi8, #tpu.memory_space<vmem>>, vector<1x128x32xi8>
    %6 = vector.shape_cast %5 : vector<1x128x32xi8> to vector<128x32xi8>
    %7 = arith.sitofp %6 : vector<128x32xi8> to vector<128x32xf32>
    %8 = arith.truncf %7 : vector<128x32xf32> to vector<128x32xbf16>
    %c0_5 = arith.constant 0 : index
    %c0_6 = arith.constant 0 : index
    %c0_7 = arith.constant 0 : index
    %9 = vector.load %arg5[%c0_5, %c0_6, %c0_7] : memref<1x128x32xi8, #tpu.memory_space<vmem>>, vector<1x128x32xi8>
    %10 = vector.shape_cast %9 : vector<1x128x32xi8> to vector<128x32xi8>
    %11 = arith.sitofp %10 : vector<128x32xi8> to vector<128x32xf32>
    %12 = arith.truncf %11 : vector<128x32xf32> to vector<128x32xbf16>
    %c0_8 = arith.constant 0 : index
    %c0_9 = arith.constant 0 : index
    %c0_10 = arith.constant 0 : index
    %13 = vector.load %arg6[%c0_8, %c0_9, %c0_10] : memref<1x32x128xi8, #tpu.memory_space<vmem>>, vector<1x32x128xi8>
    %14 = vector.shape_cast %13 : vector<1x32x128xi8> to vector<32x128xi8>
    %15 = arith.sitofp %14 : vector<32x128xi8> to vector<32x128xf32>
    %16 = arith.truncf %15 : vector<32x128xf32> to vector<32x128xbf16>
    %c0_11 = arith.constant 0 : index
    %c0_12 = arith.constant 0 : index
    %c0_13 = arith.constant 0 : index
    %17 = vector.load %arg7[%c0_11, %c0_12, %c0_13] : memref<1x1x128xf32, #tpu.memory_space<vmem>>, vector<1x1x128xf32>
    %18 = vector.shape_cast %17 : vector<1x1x128xf32> to vector<128xf32>
    %19 = vector.shape_cast %18 : vector<128xf32> to vector<1x128xf32>
    %c0_14 = arith.constant 0 : index
    %c0_15 = arith.constant 0 : index
    %c0_16 = arith.constant 0 : index
    %20 = vector.load %arg8[%c0_14, %c0_15, %c0_16] : memref<1x1x128xf32, #tpu.memory_space<vmem>>, vector<1x1x128xf32>
    %21 = vector.shape_cast %20 : vector<1x1x128xf32> to vector<128xf32>
    %22 = vector.shape_cast %21 : vector<128xf32> to vector<1x128xf32>
    %cst = arith.constant dense<0.000000e+00> : vector<8x128xf32>
    %23 = tpu.matmul %4, %8, %cst {dimension_numbers = #tpu.dot_dimension_numbers<[1], [1], [0], [0], [0, 0, 1, 0], [], []>} : vector<8x32xbf16>, vector<128x32xbf16>, vector<8x128xf32> -> vector<8x128xf32>
    %24 = vector.broadcast %19 : vector<1x128xf32> to vector<8x128xf32>
    %25 = arith.mulf %23, %24 : vector<8x128xf32>
    %cst_17 = arith.constant dense<0.000000e+00> : vector<8x128xf32>
    %26 = tpu.matmul %4, %12, %cst_17 {dimension_numbers = #tpu.dot_dimension_numbers<[1], [1], [0], [0], [0, 0, 1, 0], [], []>} : vector<8x32xbf16>, vector<128x32xbf16>, vector<8x128xf32> -> vector<8x128xf32>
    %27 = vector.broadcast %22 : vector<1x128xf32> to vector<8x128xf32>
    %28 = arith.mulf %26, %27 : vector<8x128xf32>
    %29 = arith.negf %25 : vector<8x128xf32>
    %30 = math.exp %29 : vector<8x128xf32>
    %cst_18 = arith.constant 1.000000e+00 : f32
    %31 = vector.broadcast %cst_18 : f32 to vector<8x128xf32>
    %32 = arith.addf %31, %30 : vector<8x128xf32>
    %33 = arith.divf %31, %32 : vector<8x128xf32>
    %34 = arith.mulf %25, %33 : vector<8x128xf32>
    %35 = arith.mulf %34, %28 : vector<8x128xf32>
    %c0_19 = arith.constant 0 : index
    %c0_20 = arith.constant 0 : index
    %36 = vector.load %arg11[%c0_19, %c0_20] : memref<8x32xf32, #tpu.memory_space<vmem>>, vector<8x32xf32>
    %37 = arith.truncf %35 : vector<8x128xf32> to vector<8x128xbf16>
    %cst_21 = arith.constant dense<0.000000e+00> : vector<8x32xf32>
    %38 = tpu.matmul %37, %16, %cst_21 {dimension_numbers = #tpu.dot_dimension_numbers<[1], [1], [0], [0], [0, 0, 1, 0], [], []>} : vector<8x128xbf16>, vector<32x128xbf16>, vector<8x32xf32> -> vector<8x32xf32>
    %39 = arith.addf %36, %38 : vector<8x32xf32>
    %c0_22 = arith.constant 0 : index
    %c0_23 = arith.constant 0 : index
    %40 = vector.load %arg11[%c0_22, %c0_23] : memref<8x32xf32, #tpu.memory_space<vmem>>, vector<8x32xf32>
    tpu.vector_store %arg11[%c0_22, %c0_23], %39 {strides = array<i32>} : memref<8x32xf32, #tpu.memory_space<vmem>>, vector<8x32xf32>,
    %c1_i32 = arith.constant 1 : i32
    %41 = arith.cmpi eq, %arg1, %c1_i32 : i32
    %42 = arith.extui %41 : i1 to i32
    %c0_i32_24 = arith.constant 0 : i32
    %43 = arith.cmpi ne, %42, %c0_i32_24 : i32
    scf.if %43 {
      %c0_25 = arith.constant 0 : index
      %c0_26 = arith.constant 0 : index
      %c0_27 = arith.constant 0 : index
      %44 = vector.load %arg9[%c0_25, %c0_26, %c0_27] : memref<1x1x32xf32, #tpu.memory_space<vmem>>, vector<1x1x32xf32>
      %45 = vector.shape_cast %44 : vector<1x1x32xf32> to vector<32xf32>
      %46 = vector.shape_cast %45 : vector<32xf32> to vector<1x32xf32>
      %c0_28 = arith.constant 0 : index
      %c0_29 = arith.constant 0 : index
      %47 = vector.load %arg11[%c0_28, %c0_29] : memref<8x32xf32, #tpu.memory_space<vmem>>, vector<8x32xf32>
      %48 = vector.broadcast %46 : vector<1x32xf32> to vector<8x32xf32>
      %49 = arith.mulf %47, %48 : vector<8x32xf32>
      %c0_30 = arith.constant 0 : index
      %c0_31 = arith.constant 0 : index
      %50 = vector.load %arg10[%c0_30, %c0_31] : memref<8x32xf32, #tpu.memory_space<vmem>>, vector<8x32xf32>
      tpu.vector_store %arg10[%c0_30, %c0_31], %49 {strides = array<i32>} : memref<8x32xf32, #tpu.memory_space<vmem>>, vector<8x32xf32>,
    } else {
    }
    return
  }
  func.func @transform_0(%arg0: i32, %arg1: i32, %arg2: memref<6xi32, #tpu.memory_space<smem>>) -> (i32, i32) {
    %c0_i32 = arith.constant 0 : i32
    %c0_i32_0 = arith.constant 0 : i32
    return %arg0, %c0_i32 : i32, i32
  }
  func.func @transform_1(%arg0: i32, %arg1: i32, %arg2: memref<6xi32, #tpu.memory_space<smem>>) -> (i32, i32, i32) {
    %0 = arith.index_cast %arg0 : i32 to index
    %1 = memref.load %arg2[%0] : memref<6xi32, #tpu.memory_space<smem>>
    %c0_i32 = arith.constant 0 : i32
    %c0_i32_0 = arith.constant 0 : i32
    return %1, %arg1, %c0_i32 : i32, i32, i32
  }
  func.func @transform_2(%arg0: i32, %arg1: i32, %arg2: memref<6xi32, #tpu.memory_space<smem>>) -> (i32, i32, i32) {
    %0 = arith.index_cast %arg0 : i32 to index
    %1 = memref.load %arg2[%0] : memref<6xi32, #tpu.memory_space<smem>>
    %c0_i32 = arith.constant 0 : i32
    %c0_i32_0 = arith.constant 0 : i32
    return %1, %arg1, %c0_i32 : i32, i32, i32
  }
  func.func @transform_3(%arg0: i32, %arg1: i32, %arg2: memref<6xi32, #tpu.memory_space<smem>>) -> (i32, i32, i32) {
    %0 = arith.index_cast %arg0 : i32 to index
    %1 = memref.load %arg2[%0] : memref<6xi32, #tpu.memory_space<smem>>
    %c0_i32 = arith.constant 0 : i32
    %c0_i32_0 = arith.constant 0 : i32
    return %1, %c0_i32, %arg1 : i32, i32, i32
  }
  func.func @transform_4(%arg0: i32, %arg1: i32, %arg2: memref<6xi32, #tpu.memory_space<smem>>) -> (i32, i32, i32) {
    %0 = arith.index_cast %arg0 : i32 to index
    %1 = memref.load %arg2[%0] : memref<6xi32, #tpu.memory_space<smem>>
    %c0_i32 = arith.constant 0 : i32
    %c0_i32_0 = arith.constant 0 : i32
    return %1, %c0_i32, %arg1 : i32, i32, i32
  }
  func.func @transform_5(%arg0: i32, %arg1: i32, %arg2: memref<6xi32, #tpu.memory_space<smem>>) -> (i32, i32, i32) {
    %0 = arith.index_cast %arg0 : i32 to index
    %1 = memref.load %arg2[%0] : memref<6xi32, #tpu.memory_space<smem>>
    %c0_i32 = arith.constant 0 : i32
    %c0_i32_0 = arith.constant 0 : i32
    return %1, %c0_i32, %arg1 : i32, i32, i32
  }
  func.func @transform_6(%arg0: i32, %arg1: i32, %arg2: memref<6xi32, #tpu.memory_space<smem>>) -> (i32, i32, i32) {
    %0 = arith.index_cast %arg0 : i32 to index
    %1 = memref.load %arg2[%0] : memref<6xi32, #tpu.memory_space<smem>>
    %c0_i32 = arith.constant 0 : i32
    %c0_i32_0 = arith.constant 0 : i32
    %c0_i32_1 = arith.constant 0 : i32
    return %1, %c0_i32, %c0_i32_0 : i32, i32, i32
  }
  func.func @transform_7(%arg0: i32, %arg1: i32, %arg2: memref<6xi32, #tpu.memory_space<smem>>) -> (i32, i32) {
    %c0_i32 = arith.constant 0 : i32
    %c0_i32_0 = arith.constant 0 : i32
    return %arg0, %c0_i32 : i32, i32
  }
}

</mosaic_0001>

<llo_original>
// kernel: tpu_custom_call.1
$region0: #{tpu_custom_call.1}
  #allocation0 [shape = 'u32[]', space=smem, size = 0x4, offset = 0x4, fixed_abs, tag = 'smem constant byte address 0x4 - core index']
  #allocation1 [shape = 'u32[144,128]{1,0:T(1,128)}', space=vmem, size = 0x12000, scoped, tag = 'internal scratch']
  #allocation2 [shape = 'f32[8,32]{1,0:T(8,128)}', space=vmem, size = 0x1000, scoped, tag = 'scratch operand']
  #allocation3 [shape = 's32[1]{0}', space=sflag, size = 0x4, scoped, tag = 'scoped memory for tpu_custom_call.1']
  #allocation4 [shape = 'u8[512]{0}', space=smem, size = 0x200, scoped, tag = 'prefetched SMEM operand 0']
  %s0 = inlined_call_operand.vmem [shape: s32[6], index: 0, kind: input, shape index: {}]
  %s1 = inlined_call_operand.vmem [shape: f32[48,32], index: 1, kind: input, shape index: {}]
  %s2 = inlined_call_operand.vmem [shape: s8[4,256,32], index: 2, kind: input, shape index: {}]
  %s3 = inlined_call_operand.vmem [shape: s8[4,256,32], index: 3, kind: input, shape index: {}]
  %s4 = inlined_call_operand.vmem [shape: s8[4,32,256], index: 4, kind: input, shape index: {}]
  %s5 = inlined_call_operand.vmem [shape: f32[4,1,256], index: 5, kind: input, shape index: {}]
  %s6 = inlined_call_operand.vmem [shape: f32[4,1,256], index: 6, kind: input, shape index: {}]
  %s7 = inlined_call_operand.vmem [shape: f32[4,1,32], index: 7, kind: input, shape index: {}]
  %s8 = inlined_call_operand.vmem [shape: f32[48,32], index: 8, kind: output, shape index: {}]
  %s9 = sld [smem:[#allocation0]]
  $region69: #{tpu_custom_call.1} parent=0
    _
  %s11 = ssub.s32 1, %s9
  %s12 = scalar_select 0, %s11, %s9
  %s13 = sshll.u32 %s0, 4
  %s14 = int_to_ptr.vmem [resolvable:$true] %s13
  %16 = dma.vmem_to_smem %s14, 16, [#allocation4], [#allocation3]
  %17 = dma.done [#allocation3], 16
  %18 = sfence
  loop: start=0, step=1, limit=14
  $region2: #{tpu_custom_call.1} parent=0 // loop_pre_header
    _
  $region3: #{tpu_custom_call.1} parent=0 // loop_header
    %s20 = sphi 0, %s24
    %p21 = scmp.ge.s32.totalorder %s20, 14
    %s27 = sphi 0, %s39
    %s28 = sphi 0, %s35
    %s29 = sphi 0, %s27
    %s30 = sphi 0, %s28
    %s31 = sphi 0, %s29
    %s32 = sphi 0, %s30
    %s42 = sphi 0, %s44
    %s45 = sphi 0, %s42
    %s46 = sphi 0, %s45
    %s62 = sphi 0, %s46
    %s72 = sphi 0, %s74
    %s75 = sphi 0, %s72
    %s76 = sphi 0, %s75
    %s92 = sphi 0, %s76
    %s102 = sphi 0, %s104
    %s105 = sphi 0, %s102
    %s106 = sphi 0, %s105
    %s122 = sphi 0, %s106
    %s132 = sphi 0, %s134
    %s135 = sphi 0, %s132
    %s136 = sphi 0, %s135
    %s152 = sphi 0, %s136
    %s162 = sphi 0, %s164
    %s165 = sphi 0, %s162
    %s166 = sphi 0, %s165
    %s182 = sphi 0, %s166
    %s192 = sphi 0, %s194
    %s195 = sphi 0, %s192
    %s196 = sphi 0, %s195
    %s212 = sphi 0, %s196
    %s220 = sphi 0, %s222
    %s223 = sphi 0, %s220
    %s224 = sphi 0, %s223
    %s240 = sphi 0, %s224
    %s246 = sphi 0, %s248
    %s249 = sphi 0, %s246
    %s250 = sphi 0, %s249
    %s266 = sphi 0, %s250
  $region4: #{tpu_custom_call.1} parent=0 // loop_header_branch
    %23 = sbr.rel (%p21) target = $region8
  $region5: #{tpu_custom_call.1} parent=0 // loop_body
    %s25 = ssub.s32 %s20, 1
    %s26 = ssub.s32 %s20, 2
    %s33 = sadd.s32 1, %s28
    %p34 = scmp.ge.s32.totalorder %s33, 2
    %s35 = scalar_select %p34, 0, %s33
    %s36 = sadd.s32 1, %s27
    %s37 = scalar_select %p34, %s36, %s27
    %p38 = scmp.ge.s32.totalorder %s37, 6
    %s39 = scalar_select %p38, 0, %s37
    %s40 = ssub.s32 %s27, %s39
    %p41 = scmp.eq.s32.totalorder %s40, 0
    %s43 = sadd.s32 %s42, 1
    %s44 = scalar_select %p41, %s42, %s43
    %p47 = pneg %p41
    %p48 = scmp.eq.s32.totalorder %s20, 11
    %p49 = por %p47, %p48
    %p50 = scmp.ne.s32.totalorder %s42, %s45
    %p51 = scmp.eq.s32.totalorder %s20, 0
    %p52 = por %p50, %p51
    %p53 = scmp.ne.s32.totalorder %s42, %s45
    %p54 = scmp.eq.s32.totalorder %s25, 11
    %p55 = por %p53, %p54
    %p56 = scmp.ne.s32.totalorder %s45, %s46
    %p57 = scmp.eq.s32.totalorder %s25, 0
    %p58 = por %p56, %p57
    %p59 = scmp.ne.s32.totalorder %s45, %s46
    %p60 = scmp.eq.s32.totalorder %s26, 11
    %p61 = por %p59, %p60
    %p63 = scmp.ne.s32.totalorder %s46, %s62
    %p64 = scmp.eq.s32.totalorder %s26, 0
    %p65 = por %p63, %p64
    %s66 = sld [smem:[#allocation4 + %s27]]
    %s67 = sld [smem:[#allocation4 + %s39]]
    %s68 = ssub.s32 %s66, %s67
    %s69 = ssub.s32 %s28, %s35
    %s70 = sor.u32 %s68, %s69
    %p71 = scmp.eq.s32.totalorder %s70, 0
    %s73 = sadd.s32 %s72, 1
    %s74 = scalar_select %p71, %s72, %s73
    %p77 = pneg %p71
    %p78 = scmp.eq.s32.totalorder %s20, 11
    %p79 = por %p77, %p78
    %p80 = scmp.ne.s32.totalorder %s72, %s75
    %p81 = scmp.eq.s32.totalorder %s20, 0
    %p82 = por %p80, %p81
    %p83 = scmp.ne.s32.totalorder %s72, %s75
    %p84 = scmp.eq.s32.totalorder %s25, 11
    %p85 = por %p83, %p84
    %p86 = scmp.ne.s32.totalorder %s75, %s76
    %p87 = scmp.eq.s32.totalorder %s25, 0
    %p88 = por %p86, %p87
    %p89 = scmp.ne.s32.totalorder %s75, %s76
    %p90 = scmp.eq.s32.totalorder %s26, 11
    %p91 = por %p89, %p90
    %p93 = scmp.ne.s32.totalorder %s76, %s92
    %p94 = scmp.eq.s32.totalorder %s26, 0
    %p95 = por %p93, %p94
    %s96 = sld [smem:[#allocation4 + %s27]]
    %s97 = sld [smem:[#allocation4 + %s39]]
    %s98 = ssub.s32 %s96, %s97
    %s99 = ssub.s32 %s28, %s35
    %s100 = sor.u32 %s98, %s99
    %p101 = scmp.eq.s32.totalorder %s100, 0
    %s103 = sadd.s32 %s102, 1
    %s104 = scalar_select %p101, %s102, %s103
    %p107 = pneg %p101
    %p108 = scmp.eq.s32.totalorder %s20, 11
    %p109 = por %p107, %p108
    %p110 = scmp.ne.s32.totalorder %s102, %s105
    %p111 = scmp.eq.s32.totalorder %s20, 0
    %p112 = por %p110, %p111
    %p113 = scmp.ne.s32.totalorder %s102, %s105
    %p114 = scmp.eq.s32.totalorder %s25, 11
    %p115 = por %p113, %p114
    %p116 = scmp.ne.s32.totalorder %s105, %s106
    %p117 = scmp.eq.s32.totalorder %s25, 0
    %p118 = por %p116, %p117
    %p119 = scmp.ne.s32.totalorder %s105, %s106
    %p120 = scmp.eq.s32.totalorder %s26, 11
    %p121 = por %p119, %p120
    %p123 = scmp.ne.s32.totalorder %s106, %s122
    %p124 = scmp.eq.s32.totalorder %s26, 0
    %p125 = por %p123, %p124
    %s126 = sld [smem:[#allocation4 + %s27]]
    %s127 = sld [smem:[#allocation4 + %s39]]
    %s128 = ssub.s32 %s126, %s127
    %s129 = ssub.s32 %s28, %s35
    %s130 = sor.u32 %s128, %s129
    %p131 = scmp.eq.s32.totalorder %s130, 0
    %s133 = sadd.s32 %s132, 1
    %s134 = scalar_select %p131, %s132, %s133
    %p137 = pneg %p131
    %p138 = scmp.eq.s32.totalorder %s20, 11
    %p139 = por %p137, %p138
    %p140 = scmp.ne.s32.totalorder %s132, %s135
    %p141 = scmp.eq.s32.totalorder %s20, 0
    %p142 = por %p140, %p141
    %p143 = scmp.ne.s32.totalorder %s132, %s135
    %p144 = scmp.eq.s32.totalorder %s25, 11
    %p145 = por %p143, %p144
    %p146 = scmp.ne.s32.totalorder %s135, %s136
    %p147 = scmp.eq.s32.totalorder %s25, 0
    %p148 = por %p146, %p147
    %p149 = scmp.ne.s32.totalorder %s135, %s136
    %p150 = scmp.eq.s32.totalorder %s26, 11
    %p151 = por %p149, %p150
    %p153 = scmp.ne.s32.totalorder %s136, %s152
    %p154 = scmp.eq.s32.totalorder %s26, 0
    %p155 = por %p153, %p154
    %s156 = sld [smem:[#allocation4 + %s27]]
    %s157 = sld [smem:[#allocation4 + %s39]]
    %s158 = ssub.s32 %s156, %s157
    %s159 = ssub.s32 %s28, %s35
    %s160 = sor.u32 %s158, %s159
    %p161 = scmp.eq.s32.totalorder %s160, 0
    %s163 = sadd.s32 %s162, 1
    %s164 = scalar_select %p161, %s162, %s163
    %p167 = pneg %p161
    %p168 = scmp.eq.s32.totalorder %s20, 11
    %p169 = por %p167, %p168
    %p170 = scmp.ne.s32.totalorder %s162, %s165
    %p171 = scmp.eq.s32.totalorder %s20, 0
    %p172 = por %p170, %p171
    %p173 = scmp.ne.s32.totalorder %s162, %s165
    %p174 = scmp.eq.s32.totalorder %s25, 11
    %p175 = por %p173, %p174
    %p176 = scmp.ne.s32.totalorder %s165, %s166
    %p177 = scmp.eq.s32.totalorder %s25, 0
    %p178 = por %p176, %p177
    %p179 = scmp.ne.s32.totalorder %s165, %s166
    %p180 = scmp.eq.s32.totalorder %s26, 11
    %p181 = por %p179, %p180
    %p183 = scmp.ne.s32.totalorder %s166, %s182
    %p184 = scmp.eq.s32.totalorder %s26, 0
    %p185 = por %p183, %p184
    %s186 = sld [smem:[#allocation4 + %s27]]
    %s187 = sld [smem:[#allocation4 + %s39]]
    %s188 = ssub.s32 %s186, %s187
    %s189 = ssub.s32 %s28, %s35
    %s190 = sor.u32 %s188, %s189
    %p191 = scmp.eq.s32.totalorder %s190, 0
    %s193 = sadd.s32 %s192, 1
    %s194 = scalar_select %p191, %s192, %s193
    %p197 = pneg %p191
    %p198 = scmp.eq.s32.totalorder %s20, 11
    %p199 = por %p197, %p198
    %p200 = scmp.ne.s32.totalorder %s192, %s195
    %p201 = scmp.eq.s32.totalorder %s20, 0
    %p202 = por %p200, %p201
    %p203 = scmp.ne.s32.totalorder %s192, %s195
    %p204 = scmp.eq.s32.totalorder %s25, 11
    %p205 = por %p203, %p204
    %p206 = scmp.ne.s32.totalorder %s195, %s196
    %p207 = scmp.eq.s32.totalorder %s25, 0
    %p208 = por %p206, %p207
    %p209 = scmp.ne.s32.totalorder %s195, %s196
    %p210 = scmp.eq.s32.totalorder %s26, 11
    %p211 = por %p209, %p210
    %p213 = scmp.ne.s32.totalorder %s196, %s212
    %p214 = scmp.eq.s32.totalorder %s26, 0
    %p215 = por %p213, %p214
    %s216 = sld [smem:[#allocation4 + %s27]]
    %s217 = sld [smem:[#allocation4 + %s39]]
    %s218 = ssub.s32 %s216, %s217
    %p219 = scmp.eq.s32.totalorder %s218, 0
    %s221 = sadd.s32 %s220, 1
    %s222 = scalar_select %p219, %s220, %s221
    %p225 = pneg %p219
    %p226 = scmp.eq.s32.totalorder %s20, 11
    %p227 = por %p225, %p226
    %p228 = scmp.ne.s32.totalorder %s220, %s223
    %p229 = scmp.eq.s32.totalorder %s20, 0
    %p230 = por %p228, %p229
    %p231 = scmp.ne.s32.totalorder %s220, %s223
    %p232 = scmp.eq.s32.totalorder %s25, 11
    %p233 = por %p231, %p232
    %p234 = scmp.ne.s32.totalorder %s223, %s224
    %p235 = scmp.eq.s32.totalorder %s25, 0
    %p236 = por %p234, %p235
    %p237 = scmp.ne.s32.totalorder %s223, %s224
    %p238 = scmp.eq.s32.totalorder %s26, 11
    %p239 = por %p237, %p238
    %p241 = scmp.ne.s32.totalorder %s224, %s240
    %p242 = scmp.eq.s32.totalorder %s26, 0
    %p243 = por %p241, %p242
    %s244 = ssub.s32 %s27, %s39
    %p245 = scmp.eq.s32.totalorder %s244, 0
    %s247 = sadd.s32 %s246, 1
    %s248 = scalar_select %p245, %s246, %s247
    %p251 = pneg %p245
    %p252 = scmp.eq.s32.totalorder %s20, 11
    %p253 = por %p251, %p252
    %p254 = scmp.ne.s32.totalorder %s246, %s249
    %p255 = scmp.eq.s32.totalorder %s20, 0
    %p256 = por %p254, %p255
    %p257 = scmp.ne.s32.totalorder %s246, %s249
    %p258 = scmp.eq.s32.totalorder %s25, 11
    %p259 = por %p257, %p258
    %p260 = scmp.ne.s32.totalorder %s249, %s250
    %p261 = scmp.eq.s32.totalorder %s25, 0
    %p262 = por %p260, %p261
    %p263 = scmp.ne.s32.totalorder %s249, %s250
    %p264 = scmp.eq.s32.totalorder %s26, 11
    %p265 = por %p263, %p264
    %p267 = scmp.ne.s32.totalorder %s250, %s266
    %p268 = scmp.eq.s32.totalorder %s26, 0
    %p269 = por %p267, %p268
    %p270 = scmp.le.s32.totalorder 1, %s20
    %p271 = scmp.lt.s32.totalorder %s20, 13
    %p272 = pnand %p270, %p271
    %p273 = pneg %p272
    // Predicated region
    $region9: #{tpu_custom_call.1} parent=5 // pred_check
      _
    $region10: #{tpu_custom_call.1} parent=5 // pred_check_branch
      %275 = sbr.rel (%p272) target = $region12
    $region11: #{tpu_custom_call.1} parent=5 // pred_region
      %s276 = ssub.s32 %s20, 1
    $region12: #{tpu_custom_call.1} parent=5 // pred_fallthru
      _
    %p277 = scmp.lt.s32.totalorder %s20, 12
    // Predicated region
    $region13: #{tpu_custom_call.1} parent=5 // pred_check
      %p278 = pneg %p277
    $region14: #{tpu_custom_call.1} parent=5 // pred_check_branch
      %280 = sbr.rel (%p278) target = $region16
    $region15: #{tpu_custom_call.1} parent=5 // pred_region
      // Predicated region
      $region17: #{tpu_custom_call.1} parent=15 // pred_check
        %p281 = pneg %p52
      $region18: #{tpu_custom_call.1} parent=15 // pred_check_branch
        %283 = sbr.rel (%p281) target = $region20
      $region19: #{tpu_custom_call.1} parent=15 // pred_region
        %p284 = scmp.lt.s32.totalorder %s27, 5
        %s285 = scalar_select %p284, %s27, 5
        %s286 = smul.addr %s285, 8
        %s287 = scalar_lea.vmem %s1, %s286
      $region20: #{tpu_custom_call.1} parent=15 // pred_fallthru
        _
      // Predicated region
      $region21: #{tpu_custom_call.1} parent=15 // pred_check
        %p288 = pneg %p82
      $region22: #{tpu_custom_call.1} parent=15 // pred_check_branch
        %290 = sbr.rel (%p288) target = $region24
      $region23: #{tpu_custom_call.1} parent=15 // pred_region
        %s291 = sld [smem:[#allocation4 + %s27]]
        %s292 = smul.u32 4, %s28
        %p293 = scmp.lt.s32.totalorder %s291, 3
        %s294 = scalar_select %p293, %s291, 3
        %p295 = scmp.lt.s32.totalorder %s292, 7
        %s296 = scalar_select %p295, %s292, 7
        %s297 = smul.addr %s294, 8
        %s298 = sadd.s32 %s296, %s297
        %s299 = smul.addr %s298, 8
        %s300 = scalar_lea.vmem %s2, %s299
        %s301 = sld [smem:[#allocation4 + %s27]]
        %s302 = smul.u32 4, %s28
      $region24: #{tpu_custom_call.1} parent=15 // pred_fallthru
        _
      // Predicated region
      $region25: #{tpu_custom_call.1} parent=15 // pred_check
        %p303 = pneg %p112
      $region26: #{tpu_custom_call.1} parent=15 // pred_check_branch
        %305 = sbr.rel (%p303) target = $region28
      $region27: #{tpu_custom_call.1} parent=15 // pred_region
        %s306 = sld [smem:[#allocation4 + %s27]]
        %s307 = smul.u32 4, %s28
        %p308 = scmp.lt.s32.totalorder %s306, 3
        %s309 = scalar_select %p308, %s306, 3
        %p310 = scmp.lt.s32.totalorder %s307, 7
        %s311 = scalar_select %p310, %s307, 7
        %s312 = smul.addr %s309, 8
        %s313 = sadd.s32 %s311, %s312
        %s314 = smul.addr %s313, 8
        %s315 = scalar_lea.vmem %s3, %s314
        %s316 = sld [smem:[#allocation4 + %s27]]
        %s317 = smul.u32 4, %s28
      $region28: #{tpu_custom_call.1} parent=15 // pred_fallthru
        _
      // Predicated region
      $region29: #{tpu_custom_call.1} parent=15 // pred_check
        %p318 = pneg %p142
      $region30: #{tpu_custom_call.1} parent=15 // pred_check_branch
        %320 = sbr.rel (%p318) target = $region32
      $region31: #{tpu_custom_call.1} parent=15 // pred_region
        %s321 = sld [smem:[#allocation4 + %s27]]
        %p322 = scmp.lt.s32.totalorder %s321, 3
        %s323 = scalar_select %p322, %s321, 3
        %p324 = scmp.lt.s32.totalorder %s28, 1
        %s325 = scalar_select %p324, %s28, 1
        %s326 = smul.addr %s323, 2
        %s327 = sadd.s32 %s325, %s326
        %s328 = smul.addr %s327, 8
        %s329 = scalar_lea.vmem %s4, %s328
        %s330 = sld [smem:[#allocation4 + %s27]]
      $region32: #{tpu_custom_call.1} parent=15 // pred_fallthru
        _
      // Predicated region
      $region33: #{tpu_custom_call.1} parent=15 // pred_check
        %p331 = pneg %p172
      $region34: #{tpu_custom_call.1} parent=15 // pred_check_branch
        %333 = sbr.rel (%p331) target = $region36
      $region35: #{tpu_custom_call.1} parent=15 // pred_region
        %s334 = sld [smem:[#allocation4 + %s27]]
        %p335 = scmp.lt.s32.totalorder %s334, 3
        %s336 = scalar_select %p335, %s334, 3
        %p337 = scmp.lt.s32.totalorder %s28, 1
        %s338 = scalar_select %p337, %s28, 1
        %s339 = smul.addr %s336, 2
        %s340 = sadd.s32 %s338, %s339
        %s341 = scalar_lea.vmem %s5, %s340
        %s342 = sld [smem:[#allocation4 + %s27]]
      $region36: #{tpu_custom_call.1} parent=15 // pred_fallthru
        _
      // Predicated region
      $region37: #{tpu_custom_call.1} parent=15 // pred_check
        %p343 = pneg %p202
      $region38: #{tpu_custom_call.1} parent=15 // pred_check_branch
        %345 = sbr.rel (%p343) target = $region40
      $region39: #{tpu_custom_call.1} parent=15 // pred_region
        %s346 = sld [smem:[#allocation4 + %s27]]
        %p347 = scmp.lt.s32.totalorder %s346, 3
        %s348 = scalar_select %p347, %s346, 3
        %p349 = scmp.lt.s32.totalorder %s28, 1
        %s350 = scalar_select %p349, %s28, 1
        %s351 = smul.addr %s348, 2
        %s352 = sadd.s32 %s350, %s351
        %s353 = scalar_lea.vmem %s6, %s352
        %s354 = sld [smem:[#allocation4 + %s27]]
      $region40: #{tpu_custom_call.1} parent=15 // pred_fallthru
        _
      // Predicated region
      $region41: #{tpu_custom_call.1} parent=15 // pred_check
        %p355 = pneg %p230
      $region42: #{tpu_custom_call.1} parent=15 // pred_check_branch
        %357 = sbr.rel (%p355) target = $region44
      $region43: #{tpu_custom_call.1} parent=15 // pred_region
        %s358 = sld [smem:[#allocation4 + %s27]]
        %p359 = scmp.lt.s32.totalorder %s358, 3
        %s360 = scalar_select %p359, %s358, 3
        %s361 = scalar_lea.vmem %s7, %s360
        %s362 = sld [smem:[#allocation4 + %s27]]
      $region44: #{tpu_custom_call.1} parent=15 // pred_fallthru
        _
    $region16: #{tpu_custom_call.1} parent=5 // pred_fallthru
      _
    %p363 = scmp.le.s32.totalorder 1, %s20
    %p364 = scmp.lt.s32.totalorder %s20, 13
    %p365 = pnand %p363, %p364
    %p366 = pneg %p365
    // Predicated region
    $region45: #{tpu_custom_call.1} parent=5 // pred_check
      _
    $region46: #{tpu_custom_call.1} parent=5 // pred_check_branch
      %368 = sbr.rel (%p365) target = $region48
    $region47: #{tpu_custom_call.1} parent=5 // pred_region
      %s369 = ssub.s32 %s20, 1
      %p370 = scmp.lt.s32.totalorder %s29, 5
      %s371 = scalar_select %p370, %s29, 5
      %s372 = smul.addr %s371, 8
      %s373 = scalar_lea.vmem %s1, %s372
      %p374 = pneg %p58
      %p375 = pneg %p55
      %s376 = sld [smem:[#allocation4 + %s29]]
      %s377 = smul.u32 4, %s30
      %p378 = scmp.lt.s32.totalorder %s376, 3
      %s379 = scalar_select %p378, %s376, 3
      %p380 = scmp.lt.s32.totalorder %s377, 7
      %s381 = scalar_select %p380, %s377, 7
      %s382 = smul.addr %s379, 8
      %s383 = sadd.s32 %s381, %s382
      %s384 = smul.addr %s383, 8
      %s385 = scalar_lea.vmem %s2, %s384
      %p386 = pneg %p88
      %p387 = pneg %p85
      %s388 = sld [smem:[#allocation4 + %s29]]
      %s389 = smul.u32 4, %s30
      %p390 = scmp.lt.s32.totalorder %s388, 3
      %s391 = scalar_select %p390, %s388, 3
      %p392 = scmp.lt.s32.totalorder %s389, 7
      %s393 = scalar_select %p392, %s389, 7
      %s394 = smul.addr %s391, 8
      %s395 = sadd.s32 %s393, %s394
      %s396 = smul.addr %s395, 8
      %s397 = scalar_lea.vmem %s3, %s396
      %p398 = pneg %p118
      %p399 = pneg %p115
      %s400 = sld [smem:[#allocation4 + %s29]]
      %p401 = scmp.lt.s32.totalorder %s400, 3
      %s402 = scalar_select %p401, %s400, 3
      %p403 = scmp.lt.s32.totalorder %s30, 1
      %s404 = scalar_select %p403, %s30, 1
      %s405 = smul.addr %s402, 2
      %s406 = sadd.s32 %s404, %s405
      %s407 = smul.addr %s406, 8
      %s408 = scalar_lea.vmem %s4, %s407
      %p409 = pneg %p148
      %p410 = pneg %p145
      %s411 = sld [smem:[#allocation4 + %s29]]
      %p412 = scmp.lt.s32.totalorder %s411, 3
      %s413 = scalar_select %p412, %s411, 3
      %p414 = scmp.lt.s32.totalorder %s30, 1
      %s415 = scalar_select %p414, %s30, 1
      %s416 = smul.addr %s413, 2
      %s417 = sadd.s32 %s415, %s416
      %s418 = scalar_lea.vmem %s5, %s417
      %p419 = pneg %p178
      %p420 = pneg %p175
      %s421 = sld [smem:[#allocation4 + %s29]]
      %p422 = scmp.lt.s32.totalorder %s421, 3
      %s423 = scalar_select %p422, %s421, 3
      %p424 = scmp.lt.s32.totalorder %s30, 1
      %s425 = scalar_select %p424, %s30, 1
      %s426 = smul.addr %s423, 2
      %s427 = sadd.s32 %s425, %s426
      %s428 = scalar_lea.vmem %s6, %s427
      %p429 = pneg %p208
      %p430 = pneg %p205
      %s431 = sld [smem:[#allocation4 + %s29]]
      %p432 = scmp.lt.s32.totalorder %s431, 3
      %s433 = scalar_select %p432, %s431, 3
      %s434 = scalar_lea.vmem %s7, %s433
      %p435 = pneg %p236
      %p436 = pneg %p233
      %p437 = pneg %p262
      %p438 = pneg %p259
      %p439 = scmp.lt.s32.totalorder %s29, 5
      %s440 = scalar_select %p439, %s29, 5
      %s441 = smul.addr %s440, 8
      %s442 = scalar_lea.vmem %s8, %s441
      %p443 = scmp.lt.s32.totalorder %s29, 5
      %s444 = scalar_select %p443, %s29, 5
      %s445 = smul.addr %s444, 8
      %s446 = scalar_lea.vmem %s1, %s445
      %s447 = sld [smem:[#allocation4 + %s29]]
      %s448 = smul.u32 4, %s30
      %p449 = scmp.lt.s32.totalorder %s447, 3
      %s450 = scalar_select %p449, %s447, 3
      %p451 = scmp.lt.s32.totalorder %s448, 7
      %s452 = scalar_select %p451, %s448, 7
      %s453 = smul.addr %s450, 8
      %s454 = sadd.s32 %s452, %s453
      %s455 = smul.addr %s454, 8
      %s456 = scalar_lea.vmem %s2, %s455
      %s457 = sld [smem:[#allocation4 + %s29]]
      %s458 = smul.u32 4, %s30
      %s459 = sld [smem:[#allocation4 + %s29]]
      %s460 = smul.u32 4, %s30
      %p461 = scmp.lt.s32.totalorder %s459, 3
      %s462 = scalar_select %p461, %s459, 3
      %p463 = scmp.lt.s32.totalorder %s460, 7
      %s464 = scalar_select %p463, %s460, 7
      %s465 = smul.addr %s462, 8
      %s466 = sadd.s32 %s464, %s465
      %s467 = smul.addr %s466, 8
      %s468 = scalar_lea.vmem %s3, %s467
      %s469 = sld [smem:[#allocation4 + %s29]]
      %s470 = smul.u32 4, %s30
      %s471 = sld [smem:[#allocation4 + %s29]]
      %p472 = scmp.lt.s32.totalorder %s471, 3
      %s473 = scalar_select %p472, %s471, 3
      %p474 = scmp.lt.s32.totalorder %s30, 1
      %s475 = scalar_select %p474, %s30, 1
      %s476 = smul.addr %s473, 2
      %s477 = sadd.s32 %s475, %s476
      %s478 = smul.addr %s477, 8
      %s479 = scalar_lea.vmem %s4, %s478
      %s480 = sld [smem:[#allocation4 + %s29]]
      %s481 = sld [smem:[#allocation4 + %s29]]
      %p482 = scmp.lt.s32.totalorder %s481, 3
      %s483 = scalar_select %p482, %s481, 3
      %p484 = scmp.lt.s32.totalorder %s30, 1
      %s485 = scalar_select %p484, %s30, 1
      %s486 = smul.addr %s483, 2
      %s487 = sadd.s32 %s485, %s486
      %s488 = scalar_lea.vmem %s5, %s487
      %s489 = sld [smem:[#allocation4 + %s29]]
      %s490 = sld [smem:[#allocation4 + %s29]]
      %p491 = scmp.lt.s32.totalorder %s490, 3
      %s492 = scalar_select %p491, %s490, 3
      %p493 = scmp.lt.s32.totalorder %s30, 1
      %s494 = scalar_select %p493, %s30, 1
      %s495 = smul.addr %s492, 2
      %s496 = sadd.s32 %s494, %s495
      %s497 = scalar_lea.vmem %s6, %s496
      %s498 = sld [smem:[#allocation4 + %s29]]
      %s499 = sld [smem:[#allocation4 + %s29]]
      %p500 = scmp.lt.s32.totalorder %s499, 3
      %s501 = scalar_select %p500, %s499, 3
      %s502 = scalar_lea.vmem %s7, %s501
      %s503 = sld [smem:[#allocation4 + %s29]]
      %p504 = scmp.lt.s32.totalorder %s29, 5
      %s505 = scalar_select %p504, %s29, 5
      %s506 = smul.addr %s505, 8
      %s507 = scalar_lea.vmem %s8, %s506
      %p509 = scmp.eq.s32.totalorder %s30, 0
      // Predicated region
      $region49: #{tpu_custom_call.1} parent=47 // pred_check
        %p510 = pneg %p509
      $region50: #{tpu_custom_call.1} parent=47 // pred_check_branch
        %512 = sbr.rel (%p510) target = $region52
      $region51: #{tpu_custom_call.1} parent=47 // pred_region
        %vm513 = vcmask 261120
        %514 = vst.msk [vmem:[#allocation2] sm:$0xff] %vm513, 0.0
      $region52: #{tpu_custom_call.1} parent=47 // pred_fallthru
        _
      %v515 = vld [vmem:[%s446] sm:$0xff]
      %v516 = vpack.c.bf16 %v515, %v515
      %v517 = vld [vmem:[%s456] sm:$0xff]
      %v518 = vld [vmem:[%s456 + $0x8] sm:$0xff]
      %v519 = vld [vmem:[%s456 + $0x10] sm:$0xff]
      %v520 = vld [vmem:[%s456 + $0x18] sm:$0xff]
      %v521 = vunpack.c.l.s8.bf16 %v517
      %v522 = vunpack.c.h.s8.bf16 %v517
      %v523 = vunpack.c.l.s8.bf16 %v518
      %v524 = vunpack.c.h.s8.bf16 %v518
      %v525 = vunpack.c.l.s8.bf16 %v519
      %v526 = vunpack.c.h.s8.bf16 %v519
      %v527 = vunpack.c.l.s8.bf16 %v520
      %v528 = vunpack.c.h.s8.bf16 %v520
      %v529 = vld [vmem:[%s468] sm:$0xff]
      %v530 = vld [vmem:[%s468 + $0x8] sm:$0xff]
      %v531 = vld [vmem:[%s468 + $0x10] sm:$0xff]
      %v532 = vld [vmem:[%s468 + $0x18] sm:$0xff]
      %v533 = vunpack.c.l.s8.bf16 %v529
      %v534 = vunpack.c.h.s8.bf16 %v529
      %v535 = vunpack.c.l.s8.bf16 %v530
      %v536 = vunpack.c.h.s8.bf16 %v530
      %v537 = vunpack.c.l.s8.bf16 %v531
      %v538 = vunpack.c.h.s8.bf16 %v531
      %v539 = vunpack.c.l.s8.bf16 %v532
      %v540 = vunpack.c.h.s8.bf16 %v532
      %v541 = vld [vmem:[%s479] sm:$0xff]
      %v542 = vunpack.c.l.s8.bf16 %v541
      %v543 = vunpack.c.h.s8.bf16 %v541
      %v544 = vld [vmem:[%s488] sm:$0x1]
      %v545 = vld [vmem:[%s497] sm:$0x1]
      %vm546 = vcmask 261120
      %v548 = vsel %vm546, %v516, 0
      %v551 = vsel %vm546, %v521, 0
      %v554 = vsel %vm546, %v522, 0
      %v557 = vsel %vm546, %v523, 0
      %v560 = vsel %vm546, %v524, 0
      %v563 = vsel %vm546, %v525, 0
      %v566 = vsel %vm546, %v526, 0
      %v569 = vsel %vm546, %v527, 0
      %v572 = vsel %vm546, %v528, 0
      %574 = vmatprep.subr.bf16.mxu0 0
      %575 = vmatpush1.bf16.xpose.msra.mxu0 %v551
      %576 = vmatprep.subr.bf16.mxu0 0
      %577 = vmatpush1.bf16.xpose.msra.mxu0 %v554
      %578 = vmatprep.subr.bf16.mxu0 0
      %579 = vmatpush1.bf16.xpose.msra.mxu0 %v557
      %580 = vmatprep.subr.bf16.mxu0 0
      %581 = vmatpush1.bf16.xpose.msra.mxu0 %v560
      %582 = vmatprep.subr.bf16.mxu0 0
      %583 = vmatpush1.bf16.xpose.msra.mxu0 %v563
      %584 = vmatprep.subr.bf16.mxu0 0
      %585 = vmatpush1.bf16.xpose.msra.mxu0 %v566
      %586 = vmatprep.subr.bf16.mxu0 0
      %587 = vmatpush1.bf16.xpose.msra.mxu0 %v569
      %588 = vmatprep.subr.bf16.mxu0 0
      %589 = vmatpush1.bf16.xpose.msra.mxu0 %v572
      %590 = vmatprep.subr.bf16.mxu0 0
      %591 = vmatpush1.bf16.xpose.msra.mxu0 0
      %592 = vmatprep.subr.bf16.mxu0 0
      %593 = vmatpush1.bf16.xpose.msra.mxu0 0
      %594 = vmatprep.subr.bf16.mxu0 0
      %595 = vmatpush1.bf16.xpose.msra.mxu0 0
      %596 = vmatprep.subr.bf16.mxu0 0
      %597 = vmatpush1.bf16.xpose.msra.mxu0 0
      %598 = vmatprep.subr.bf16.mxu0 0
      %599 = vmatpush1.bf16.xpose.msra.mxu0 0
      %600 = vmatprep.subr.bf16.mxu0 0
      %601 = vmatpush1.bf16.xpose.msra.mxu0 0
      %602 = vmatprep.subr.bf16.mxu0 0
      %603 = vmatpush1.bf16.xpose.msra.mxu0 0
      %604 = vmatprep.subr.bf16.mxu0 0
      %605 = vmatpush1.bf16.xpose.msra.mxu0 0
      %606 = vmatprep.mubr.bf16.mxu0 0
      %607 = vmatmul.mubr.bf16.gmra.mrb[0].mxu0 %v548
      %v608 = vpop.f32.mrb[0].mxu0
      %v609 = vadd.f32 0.0, %v608
      %v610 = vpop.f32.mrb[0].mxu0
      %v611 = vpop.f32.mrb[0].mxu0
      %v612 = vpop.f32.mrb[0].mxu0
      %613 = vdwg.mxu0
      %v615 = vlaneseq
      %v616 = vshrl.u32 %v615, 7
      %v617 = vsub.s32 0, %v616
      %v618 = vrot.slane %v544, %v617
      %v620 = vmul.f32 %v609, %v618
      %v622 = vsel %vm546, %v533, 0
      %v625 = vsel %vm546, %v534, 0
      %v628 = vsel %vm546, %v535, 0
      %v631 = vsel %vm546, %v536, 0
      %v634 = vsel %vm546, %v537, 0
      %v637 = vsel %vm546, %v538, 0
      %v640 = vsel %vm546, %v539, 0
      %v643 = vsel %vm546, %v540, 0
      %645 = vmatprep.subr.bf16.mxu0 0
      %646 = vmatpush1.bf16.xpose.msra.mxu0 %v622
      %647 = vmatprep.subr.bf16.mxu0 0
      %648 = vmatpush1.bf16.xpose.msra.mxu0 %v625
      %649 = vmatprep.subr.bf16.mxu0 0
      %650 = vmatpush1.bf16.xpose.msra.mxu0 %v628
      %651 = vmatprep.subr.bf16.mxu0 0
      %652 = vmatpush1.bf16.xpose.msra.mxu0 %v631
      %653 = vmatprep.subr.bf16.mxu0 0
      %654 = vmatpush1.bf16.xpose.msra.mxu0 %v634
      %655 = vmatprep.subr.bf16.mxu0 0
      %656 = vmatpush1.bf16.xpose.msra.mxu0 %v637
      %657 = vmatprep.subr.bf16.mxu0 0
      %658 = vmatpush1.bf16.xpose.msra.mxu0 %v640
      %659 = vmatprep.subr.bf16.mxu0 0
      %660 = vmatpush1.bf16.xpose.msra.mxu0 %v643
      %661 = vmatprep.subr.bf16.mxu0 0
      %662 = vmatpush1.bf16.xpose.msra.mxu0 0
      %663 = vmatprep.subr.bf16.mxu0 0
      %664 = vmatpush1.bf16.xpose.msra.mxu0 0
      %665 = vmatprep.subr.bf16.mxu0 0
      %666 = vmatpush1.bf16.xpose.msra.mxu0 0
      %667 = vmatprep.subr.bf16.mxu0 0
      %668 = vmatpush1.bf16.xpose.msra.mxu0 0
      %669 = vmatprep.subr.bf16.mxu0 0
      %670 = vmatpush1.bf16.xpose.msra.mxu0 0
      %671 = vmatprep.subr.bf16.mxu0 0
      %672 = vmatpush1.bf16.xpose.msra.mxu0 0
      %673 = vmatprep.subr.bf16.mxu0 0
      %674 = vmatpush1.bf16.xpose.msra.mxu0 0
      %675 = vmatprep.subr.bf16.mxu0 0
      %676 = vmatpush1.bf16.xpose.msra.mxu0 0
      %677 = vmatprep.mubr.bf16.mxu0 0
      %678 = vmatmul.mubr.bf16.gmra.mrb[0].mxu0 %v548
      %v679 = vpop.f32.mrb[0].mxu0
      %v680 = vadd.f32 0.0, %v679
      %v681 = vpop.f32.mrb[0].mxu0
      %v682 = vpop.f32.mrb[0].mxu0
      %v683 = vpop.f32.mrb[0].mxu0
      %684 = vdwg.mxu0
      %v686 = vlaneseq
      %v687 = vshrl.u32 %v686, 7
      %v688 = vsub.s32 0, %v687
      %v689 = vrot.slane %v545, %v688
      %v691 = vmul.f32 %v680, %v689
      %v692 = vxor.u32 %v620, 2147483648
      %v693 = vmul.f32 %v692, 1.442695
      %v694 = vpow.pop %v693
      %v695 = vadd.f32 %v694, 1.0
      %v696 = vrcp.pop %v695
      %v697 = vmul.f32 1.0, %v696
      %v698 = vmul.f32 %v620, %v697
      %v699 = vmul.f32 %v698, %v691
      %v700 = vld [vmem:[#allocation2] sm:$0xff]
      %v701 = vpack.c.bf16 %v699, %v699
      %702 = vmatprep.subr.bf16.mxu0 0
      %703 = vmatpush1.bf16.xpose.msra.mxu0 %v542
      %704 = vmatprep.subr.bf16.mxu0 0
      %705 = vmatpush1.bf16.xpose.msra.mxu0 %v543
      %706 = vmatprep.subr.bf16.mxu0 0
      %707 = vmatpush1.bf16.xpose.msra.mxu0 0
      %708 = vmatprep.subr.bf16.mxu0 0
      %709 = vmatpush1.bf16.xpose.msra.mxu0 0
      %710 = vmatprep.subr.bf16.mxu0 0
      %711 = vmatpush1.bf16.xpose.msra.mxu0 0
      %712 = vmatprep.subr.bf16.mxu0 0
      %713 = vmatpush1.bf16.xpose.msra.mxu0 0
      %714 = vmatprep.subr.bf16.mxu0 0
      %715 = vmatpush1.bf16.xpose.msra.mxu0 0
      %716 = vmatprep.subr.bf16.mxu0 0
      %717 = vmatpush1.bf16.xpose.msra.mxu0 0
      %718 = vmatprep.subr.bf16.mxu0 0
      %719 = vmatpush1.bf16.xpose.msra.mxu0 0
      %720 = vmatprep.subr.bf16.mxu0 0
      %721 = vmatpush1.bf16.xpose.msra.mxu0 0
      %722 = vmatprep.subr.bf16.mxu0 0
      %723 = vmatpush1.bf16.xpose.msra.mxu0 0
      %724 = vmatprep.subr.bf16.mxu0 0
      %725 = vmatpush1.bf16.xpose.msra.mxu0 0
      %726 = vmatprep.subr.bf16.mxu0 0
      %727 = vmatpush1.bf16.xpose.msra.mxu0 0
      %728 = vmatprep.subr.bf16.mxu0 0
      %729 = vmatpush1.bf16.xpose.msra.mxu0 0
      %730 = vmatprep.subr.bf16.mxu0 0
      %731 = vmatpush1.bf16.xpose.msra.mxu0 0
      %732 = vmatprep.subr.bf16.mxu0 0
      %733 = vmatpush1.bf16.xpose.msra.mxu0 0
      %734 = vmatprep.mubr.bf16.mxu0 0
      %735 = vmatmul.mubr.bf16.gmra.mrb[0].mxu0 %v701
      %v736 = vpop.f32.mrb[0].mxu0
      %v737 = vadd.f32 0.0, %v736
      %v738 = vpop.f32.mrb[0].mxu0
      %v739 = vpop.f32.mrb[0].mxu0
      %v740 = vpop.f32.mrb[0].mxu0
      %741 = vdwg.mxu0
      %v742 = vadd.f32 %v700, %v737
      %743 = vst.msk [vmem:[#allocation2] sm:$0xff] %vm546, %v742
      %p744 = scmp.eq.s32.totalorder %s30, 1
      // Predicated region
      $region53: #{tpu_custom_call.1} parent=47 // pred_check
        %p745 = pneg %p744
      $region54: #{tpu_custom_call.1} parent=47 // pred_check_branch
        %747 = sbr.rel (%p745) target = $region56
      $region55: #{tpu_custom_call.1} parent=47 // pred_region
        %v748 = vld [vmem:[%s502] sm:$0x1]
        %v749 = vld [vmem:[#allocation2] sm:$0xff]
        %v751 = vlaneseq
        %v752 = vshrl.u32 %v751, 7
        %v753 = vsub.s32 0, %v752
        %v754 = vrot.slane %v748, %v753
        %v756 = vmul.f32 %v749, %v754
        %757 = vst.msk [vmem:[%s507] sm:$0xff] %vm546, %v756
      $region56: #{tpu_custom_call.1} parent=47 // pred_fallthru
        _
      %p758 = scmp.lt.s32.totalorder %s29, 5
      %s759 = scalar_select %p758, %s29, 5
      %s760 = smul.addr %s759, 8
      %s761 = scalar_lea.vmem %s8, %s760
      // Predicated region
      $region57: #{tpu_custom_call.1} parent=47 // pred_check
        %p762 = pneg %p259
      $region58: #{tpu_custom_call.1} parent=47 // pred_check_branch
        %764 = sbr.rel (%p762) target = $region60
      $region59: #{tpu_custom_call.1} parent=47 // pred_region
        _
      $region60: #{tpu_custom_call.1} parent=47 // pred_fallthru
        _
    $region48: #{tpu_custom_call.1} parent=5 // pred_fallthru
      _
    %p765 = scmp.le.s32.totalorder 2, %s20
    // Predicated region
    $region61: #{tpu_custom_call.1} parent=5 // pred_check
      %p766 = pneg %p765
    $region62: #{tpu_custom_call.1} parent=5 // pred_check_branch
      %768 = sbr.rel (%p766) target = $region64
    $region63: #{tpu_custom_call.1} parent=5 // pred_region
      %s769 = ssub.s32 %s20, 2
      // Predicated region
      $region65: #{tpu_custom_call.1} parent=63 // pred_check
        %p770 = pneg %p265
      $region66: #{tpu_custom_call.1} parent=63 // pred_check_branch
        %772 = sbr.rel (%p770) target = $region68
      $region67: #{tpu_custom_call.1} parent=63 // pred_region
        %p773 = scmp.lt.s32.totalorder %s31, 5
        %s774 = scalar_select %p773, %s31, 5
        %s775 = smul.addr %s774, 8
        %s776 = scalar_lea.vmem %s8, %s775
      $region68: #{tpu_custom_call.1} parent=63 // pred_fallthru
        _
    $region64: #{tpu_custom_call.1} parent=5 // pred_fallthru
      _
  $region6: #{tpu_custom_call.1} parent=0 // loop_footer
    %s24 = sadd.s32 1, %s20
  $region7: #{tpu_custom_call.1} parent=0 // loop_footer_branch
    %19 = sbr.rel target = $region3
  $region8: #{tpu_custom_call.1} parent=0 // loop_exit
    _

</llo_original>
